<compile_context>
chip_gen: v7x
topology: tpu7x:2x2x1
jax: 0.10.0
libtpu: 0.0.40
codegen_flags: <defaults>
</compile_context>

<pallas_src>
import math

import jax
import jax.numpy as jnp
import numpy as np
from jax.experimental import pallas as pl
from jax.experimental.pallas import tpu as pltpu


# ----------------------------------------------------------------------------
# Kernel
# ----------------------------------------------------------------------------
def _bce_dice_kernel(x_ref, t_ref, out_ref,
                     inter_acc, probs_acc, tgt_acc, bce_acc):
    f = pl.program_id(1)

    @pl.when(f == 0)
    def _init():
        inter_acc[...] = jnp.zeros_like(inter_acc)
        probs_acc[...] = jnp.zeros_like(probs_acc)
        tgt_acc[...] = jnp.zeros_like(tgt_acc)
        bce_acc[...] = jnp.zeros_like(bce_acc)

    x = x_ref[...].astype(jnp.float32)
    t = t_ref[...].astype(jnp.float32)

    # Fused transcendentals: one exp(-|x|) shared by sigmoid and BCE softplus.
    e = jnp.exp(-jnp.abs(x))                              # EUP
    inv = 1.0 / (1.0 + e)
    probs = jnp.where(x >= 0.0, inv, e * inv)             # sigmoid(x)
    bce = jnp.maximum(x, 0.0) - x * t + jnp.log1p(e)      # stable BCE-with-logits

    # Elementwise accumulation only (VPU); cross-lane reduce deferred to last.
    inter_acc[...] += probs * t
    probs_acc[...] += probs
    tgt_acc[...] += t
    bce_acc[...] += bce

    @pl.when(f == pl.num_programs(1) - 1)
    def _finalize():
        r = inter_acc.shape[0]
        inter_row = jnp.sum(inter_acc[...], axis=1, keepdims=True)   # (R, 1)
        probs_row = jnp.sum(probs_acc[...], axis=1, keepdims=True)
        tgt_row = jnp.sum(tgt_acc[...], axis=1, keepdims=True)
        bce_row = jnp.sum(bce_acc[...], axis=1, keepdims=True)
        lane = jax.lax.broadcasted_iota(jnp.int32, (r, 128), 1)
        out = jnp.where(lane == 0, inter_row, 0.0)
        out = jnp.where(lane == 1, probs_row, out)
        out = jnp.where(lane == 2, tgt_row, out)
        out = jnp.where(lane == 3, bce_row, out)
        out_ref[0] = out


# ----------------------------------------------------------------------------
# Wrapper helpers
# ----------------------------------------------------------------------------
def _round_up(x, m):
    return ((x + m - 1) // m) * m


def _cdiv(a, b):
    return (a + b - 1) // b


def _choose_row_split(B, F):
    """Fill vreg sublanes for small batches: (B, F) -> (B*k, F//k)."""
    if B >= 8 or B % 8 == 0:
        return 1
    k = 8 // math.gcd(B, 8)
    while k > 1 and F % k != 0:
        k //= 2
    return max(k, 1)


def _choose_tile_f(R, Fr, itemsize, override=None):
    fr_pad128 = _round_up(Fr, 128)
    if override is not None:
        return int(min(_round_up(int(override), 128), fr_pad128))
    # VMEM bytes per feature column:
    #   2 inputs x 2 pipeline buffers x itemsize + 4 f32 accumulators.
    bytes_per_col = R * (2 * 2 * itemsize + 4 * 4)
    budget = 12 * 1024 * 1024
    tile = budget // bytes_per_col
    tile = max(512, min(tile, 65536))
    tile = max(128, (tile // 128) * 128)
    return int(min(tile, fr_pad128))


# ----------------------------------------------------------------------------
# Public entry point
# ----------------------------------------------------------------------------
def bce_dice_loss(logits, targets, *, smooth=1.0, eps=1e-7,
                  dice_weight=1.0, bce_weight=1.0, tile_f_override=None):
    """logits, targets: (B, C, H, W) (or any (B, ...)). Returns scalar f32."""
    assert logits.shape == targets.shape
    B = logits.shape[0]
    F = int(np.prod(logits.shape[1:]))

    if not jnp.issubdtype(logits.dtype, jnp.floating):
        logits = logits.astype(jnp.float32)
    if not jnp.issubdtype(targets.dtype, jnp.floating):
        targets = targets.astype(jnp.float32)

    k = _choose_row_split(B, F)
    R = B * k
    Fr = F // k

    x_item = jnp.dtype(logits.dtype).itemsize
    t_item = jnp.dtype(targets.dtype).itemsize
    tile_f = _choose_tile_f(R, Fr, max(x_item, t_item), tile_f_override)

    total_tiles = _cdiv(Fr, tile_f)
    num_shards = 2 if total_tiles >= 2 else 1          # 2 TCs on v7x
    tiles_per_shard = _cdiv(total_tiles, num_shards)
    fr_pad = num_shards * tiles_per_shard * tile_f

    x = logits.reshape(R, Fr)
    t = targets.reshape(R, Fr)
    if fr_pad != Fr:
        pad = fr_pad - Fr
        # finfo.min logits + 0 targets contribute exactly 0 to every sum:
        # sigmoid(min) = 0, max(min,0) - min*0 + log1p(exp(-|min|)) = 0.
        neg = float(jnp.finfo(logits.dtype).min)
        x = jnp.pad(x, ((0, 0), (0, pad)), constant_values=neg)
        t = jnp.pad(t, ((0, 0), (0, pad)))

    in_bytes = 2 * R * tile_f * (x_item + t_item)       # double-buffered inputs
    acc_bytes = 4 * R * tile_f * 4                      # f32 accumulators
    out_bytes = 2 * num_shards * R * 128 * 4
    vmem_limit = int(min(max(in_bytes + acc_bytes + out_bytes + (2 << 20),
                             8 << 20), 48 << 20))

    n_elem = R * fr_pad
    cost = pl.CostEstimate(
        flops=int(16 * n_elem),
        transcendentals=int(3 * n_elem),
        bytes_accessed=int(R * fr_pad * (x_item + t_item)
                           + num_shards * R * 128 * 4),
    )

    out = pl.pallas_call(
        _bce_dice_kernel,
        out_shape=jax.ShapeDtypeStruct((num_shards, R, 128), jnp.float32),
        grid_spec=pltpu.PrefetchScalarGridSpec(
            num_scalar_prefetch=0,
            grid=(num_shards, tiles_per_shard),
            in_specs=[
                pl.BlockSpec((R, tile_f),
                             lambda s, f: (0, s * tiles_per_shard + f)),
                pl.BlockSpec((R, tile_f),
                             lambda s, f: (0, s * tiles_per_shard + f)),
            ],
            out_specs=pl.BlockSpec((1, R, 128), lambda s, f: (s, 0, 0)),
            scratch_shapes=[pltpu.VMEM((R, tile_f), jnp.float32)] * 4,
        ),
        compiler_params=pltpu.CompilerParams(
            dimension_semantics=("parallel", "arbitrary"),
            vmem_limit_bytes=vmem_limit,
        ),
        cost_estimate=cost,
    )(x, t)

    # Tiny epilogue: exact dice / BCE scalar combine in f32.
    stats = out[:, :, :4].sum(axis=0)                   # (R, 4)  fold shards
    per_batch = stats.reshape(B, k, 4).sum(axis=1)      # (B, 4)  fold row-split
    inter = per_batch[:, 0]
    psum = per_batch[:, 1]
    tsum = per_batch[:, 2]
    bce_total = jnp.sum(per_batch[:, 3])

    dice = (2.0 * inter + smooth) / (psum + tsum + smooth + eps)
    dice_loss = 1.0 - jnp.mean(dice)
    bce_loss = bce_total / float(B * F)
    return dice_weight * dice_loss + bce_weight * bce_loss


# ----------------------------------------------------------------------------
# Pure-JAX reference (mirrors the PyTorch module)
# ----------------------------------------------------------------------------
def _reference(logits, targets, smooth=1.0, eps=1e-7,
               dice_weight=1.0, bce_weight=1.0):
    B = logits.shape[0]
    x = logits.reshape(B, -1).astype(jnp.float32)
    t = targets.reshape(B, -1).astype(jnp.float32)
    probs = jax.nn.sigmoid(x)
    inter = jnp.sum(probs * t, axis=1)
    union = jnp.sum(probs, axis=1) + jnp.sum(t, axis=1)
    dice = (2.0 * inter + smooth) / (union + smooth + eps)
    dice_loss = 1.0 - jnp.mean(dice)
    bce = jnp.maximum(x, 0.0) - x * t + jnp.log1p(jnp.exp(-jnp.abs(x)))
    bce_loss = jnp.mean(bce)
    return dice_weight * dice_loss + bce_weight * bce_loss


if __name__ == "__main__":
    key = jax.random.PRNGKey(0)

    def _make(shape, k):
        k1, k2 = jax.random.split(k)
        lg = jax.random.normal(k1, shape, dtype=jnp.float32)
        tg = (jax.random.uniform(k2, shape) > 0.5).astype(jnp.float32)
        return lg, tg

    k0, k1, k2 = jax.random.split(key, 3)

    # 1) Base case (B, C, H, W) = (2, 4, 16, 16): single tile, sublane fill.
    logits, targets = _make((2, 4, 16, 16), k0)
    loss = jax.block_until_ready(bce_dice_loss(logits, targets))
    np.testing.assert_allclose(np.asarray(loss),
                               np.asarray(_reference(logits, targets)),
                               rtol=1e-5, atol=1e-5)

    # 2) Ragged feature count: exercises the zero-contribution padding path.
    logits, targets = _make((2, 3, 11, 11), k1)
    loss = jax.block_until_ready(bce_dice_loss(logits, targets))
    np.testing.assert_allclose(np.asarray(loss),
                               np.asarray(_reference(logits, targets)),
                               rtol=1e-5, atol=1e-5)

    # 3) Multi-tile / two-shard streaming reduction (forced small tile).
    logits, targets = _make((2, 4, 32, 32), k2)
    loss = jax.block_until_ready(
        bce_dice_loss(logits, targets, tile_f_override=256))
    np.testing.assert_allclose(np.asarray(loss),
                               np.asarray(_reference(logits, targets)),
                               rtol=1e-5, atol=1e-5)

    print("KERNEL_OK")
</pallas_src>

<mosaic_0001>
module attributes {stable_mosaic.version = 11 : i64} {
  func.func @_bce_dice_kernel(%arg0: i32, %arg1: i32, %arg2: memref<8x256xf32, #tpu.memory_space<vmem>>, %arg3: memref<8x256xf32, #tpu.memory_space<vmem>>, %arg4: memref<1x8x128xf32, #tpu.memory_space<vmem>>, %arg5: memref<8x256xf32, #tpu.memory_space<vmem>>, %arg6: memref<8x256xf32, #tpu.memory_space<vmem>>, %arg7: memref<8x256xf32, #tpu.memory_space<vmem>>, %arg8: memref<8x256xf32, #tpu.memory_space<vmem>>) attributes {dimension_semantics = [#tpu.dimension_semantics<parallel>, #tpu.dimension_semantics<arbitrary>], iteration_bounds = array<i64: 1, 1>, scalar_prefetch = 0 : i64, scratch_operands = 4 : i64, tpu.core_type = #tpu.core_type<tc>, window_params = [{transform_indices = @transform_0, window_bounds = array<i64: 8, 256>}, {transform_indices = @transform_1, window_bounds = array<i64: 8, 256>}, {transform_indices = @transform_2, window_bounds = array<i64: 1, 8, 128>}]} {
    %c0_i32 = arith.constant 0 : i32
    %0 = arith.cmpi eq, %arg1, %c0_i32 : i32
    %1 = arith.extui %0 : i1 to i32
    %c0_i32_0 = arith.constant 0 : i32
    %2 = arith.cmpi ne, %1, %c0_i32_0 : i32
    scf.if %2 {
      %cst_26 = arith.constant 0.000000e+00 : f32
      %39 = vector.broadcast %cst_26 : f32 to vector<8x256xf32>
      %c0_27 = arith.constant 0 : index
      %c0_28 = arith.constant 0 : index
      %40 = vector.load %arg5[%c0_27, %c0_28] : memref<8x256xf32, #tpu.memory_space<vmem>>, vector<8x256xf32>
      tpu.vector_store %arg5[%c0_27, %c0_28], %39 {strides = array<i32>} : memref<8x256xf32, #tpu.memory_space<vmem>>, vector<8x256xf32>,
      %cst_29 = arith.constant 0.000000e+00 : f32
      %41 = vector.broadcast %cst_29 : f32 to vector<8x256xf32>
      %c0_30 = arith.constant 0 : index
      %c0_31 = arith.constant 0 : index
      %42 = vector.load %arg6[%c0_30, %c0_31] : memref<8x256xf32, #tpu.memory_space<vmem>>, vector<8x256xf32>
      tpu.vector_store %arg6[%c0_30, %c0_31], %41 {strides = array<i32>} : memref<8x256xf32, #tpu.memory_space<vmem>>, vector<8x256xf32>,
      %cst_32 = arith.constant 0.000000e+00 : f32
      %43 = vector.broadcast %cst_32 : f32 to vector<8x256xf32>
      %c0_33 = arith.constant 0 : index
      %c0_34 = arith.constant 0 : index
      %44 = vector.load %arg7[%c0_33, %c0_34] : memref<8x256xf32, #tpu.memory_space<vmem>>, vector<8x256xf32>
      tpu.vector_store %arg7[%c0_33, %c0_34], %43 {strides = array<i32>} : memref<8x256xf32, #tpu.memory_space<vmem>>, vector<8x256xf32>,
      %cst_35 = arith.constant 0.000000e+00 : f32
      %45 = vector.broadcast %cst_35 : f32 to vector<8x256xf32>
      %c0_36 = arith.constant 0 : index
      %c0_37 = arith.constant 0 : index
      %46 = vector.load %arg8[%c0_36, %c0_37] : memref<8x256xf32, #tpu.memory_space<vmem>>, vector<8x256xf32>
      tpu.vector_store %arg8[%c0_36, %c0_37], %45 {strides = array<i32>} : memref<8x256xf32, #tpu.memory_space<vmem>>, vector<8x256xf32>,
    } else {
    }
    %c0 = arith.constant 0 : index
    %c0_1 = arith.constant 0 : index
    %3 = vector.load %arg2[%c0, %c0_1] : memref<8x256xf32, #tpu.memory_space<vmem>>, vector<8x256xf32>
    %c0_2 = arith.constant 0 : index
    %c0_3 = arith.constant 0 : index
    %4 = vector.load %arg3[%c0_2, %c0_3] : memref<8x256xf32, #tpu.memory_space<vmem>>, vector<8x256xf32>
    %5 = math.absf %3 : vector<8x256xf32>
    %cst = arith.constant 0.000000e+00 : f32
    %6 = vector.broadcast %cst : f32 to vector<8x256xf32>
    %7 = arith.subf %6, %5 : vector<8x256xf32>
    %8 = math.exp %7 : vector<8x256xf32>
    %cst_4 = arith.constant 1.000000e+00 : f32
    %9 = vector.broadcast %cst_4 : f32 to vector<8x256xf32>
    %10 = arith.addf %9, %8 : vector<8x256xf32>
    %cst_5 = arith.constant 1.000000e+00 : f32
    %11 = vector.broadcast %cst_5 : f32 to vector<8x256xf32>
    %12 = arith.divf %11, %10 : vector<8x256xf32>
    %cst_6 = arith.constant 0.000000e+00 : f32
    %13 = vector.broadcast %cst_6 : f32 to vector<8x256xf32>
    %14 = arith.cmpf oge, %3, %13 : vector<8x256xf32>
    %15 = arith.mulf %8, %12 : vector<8x256xf32>
    %16 = arith.select %14, %12, %15 : vector<8x256xi1>, vector<8x256xf32>
    %cst_7 = arith.constant 0.000000e+00 : f32
    %17 = vector.broadcast %cst_7 : f32 to vector<8x256xf32>
    %18 = arith.maximumf %3, %17 : vector<8x256xf32>
    %19 = arith.mulf %3, %4 : vector<8x256xf32>
    %20 = arith.subf %18, %19 : vector<8x256xf32>
    %21 = math.log1p %8 : vector<8x256xf32>
    %22 = arith.addf %20, %21 : vector<8x256xf32>
    %c0_8 = arith.constant 0 : index
    %c0_9 = arith.constant 0 : index
    %23 = vector.load %arg5[%c0_8, %c0_9] : memref<8x256xf32, #tpu.memory_space<vmem>>, vector<8x256xf32>
    %24 = arith.mulf %16, %4 : vector<8x256xf32>
    %25 = arith.addf %23, %24 : vector<8x256xf32>
    %c0_10 = arith.constant 0 : index
    %c0_11 = arith.constant 0 : index
    %26 = vector.load %arg5[%c0_10, %c0_11] : memref<8x256xf32, #tpu.memory_space<vmem>>, vector<8x256xf32>
    tpu.vector_store %arg5[%c0_10, %c0_11], %25 {strides = array<i32>} : memref<8x256xf32, #tpu.memory_space<vmem>>, vector<8x256xf32>,
    %c0_12 = arith.constant 0 : index
    %c0_13 = arith.constant 0 : index
    %27 = vector.load %arg6[%c0_12, %c0_13] : memref<8x256xf32, #tpu.memory_space<vmem>>, vector<8x256xf32>
    %28 = arith.addf %27, %16 : vector<8x256xf32>
    %c0_14 = arith.constant 0 : index
    %c0_15 = arith.constant 0 : index
    %29 = vector.load %arg6[%c0_14, %c0_15] : memref<8x256xf32, #tpu.memory_space<vmem>>, vector<8x256xf32>
    tpu.vector_store %arg6[%c0_14, %c0_15], %28 {strides = array<i32>} : memref<8x256xf32, #tpu.memory_space<vmem>>, vector<8x256xf32>,
    %c0_16 = arith.constant 0 : index
    %c0_17 = arith.constant 0 : index
    %30 = vector.load %arg7[%c0_16, %c0_17] : memref<8x256xf32, #tpu.memory_space<vmem>>, vector<8x256xf32>
    %31 = arith.addf %30, %4 : vector<8x256xf32>
    %c0_18 = arith.constant 0 : index
    %c0_19 = arith.constant 0 : index
    %32 = vector.load %arg7[%c0_18, %c0_19] : memref<8x256xf32, #tpu.memory_space<vmem>>, vector<8x256xf32>
    tpu.vector_store %arg7[%c0_18, %c0_19], %31 {strides = array<i32>} : memref<8x256xf32, #tpu.memory_space<vmem>>, vector<8x256xf32>,
    %c0_20 = arith.constant 0 : index
    %c0_21 = arith.constant 0 : index
    %33 = vector.load %arg8[%c0_20, %c0_21] : memref<8x256xf32, #tpu.memory_space<vmem>>, vector<8x256xf32>
    %34 = arith.addf %33, %22 : vector<8x256xf32>
    %c0_22 = arith.constant 0 : index
    %c0_23 = arith.constant 0 : index
    %35 = vector.load %arg8[%c0_22, %c0_23] : memref<8x256xf32, #tpu.memory_space<vmem>>, vector<8x256xf32>
    tpu.vector_store %arg8[%c0_22, %c0_23], %34 {strides = array<i32>} : memref<8x256xf32, #tpu.memory_space<vmem>>, vector<8x256xf32>,
    %c0_i32_24 = arith.constant 0 : i32
    %36 = arith.cmpi eq, %arg1, %c0_i32_24 : i32
    %37 = arith.extui %36 : i1 to i32
    %c0_i32_25 = arith.constant 0 : i32
    %38 = arith.cmpi ne, %37, %c0_i32_25 : i32
    scf.if %38 {
      %c0_26 = arith.constant 0 : index
      %c0_27 = arith.constant 0 : index
      %39 = vector.load %arg5[%c0_26, %c0_27] : memref<8x256xf32, #tpu.memory_space<vmem>>, vector<8x256xf32>
      %cst_28 = arith.constant dense<0.000000e+00> : vector<8xf32>
      %40 = vector.multi_reduction <add>, %39, %cst_28 [1] : vector<8x256xf32> to vector<8xf32>
      %41 = vector.shape_cast %40 : vector<8xf32> to vector<8x1xf32>
      %c0_29 = arith.constant 0 : index
      %c0_30 = arith.constant 0 : index
      %42 = vector.load %arg6[%c0_29, %c0_30] : memref<8x256xf32, #tpu.memory_space<vmem>>, vector<8x256xf32>
      %cst_31 = arith.constant dense<0.000000e+00> : vector<8xf32>
      %43 = vector.multi_reduction <add>, %42, %cst_31 [1] : vector<8x256xf32> to vector<8xf32>
      %44 = vector.shape_cast %43 : vector<8xf32> to vector<8x1xf32>
      %c0_32 = arith.constant 0 : index
      %c0_33 = arith.constant 0 : index
      %45 = vector.load %arg7[%c0_32, %c0_33] : memref<8x256xf32, #tpu.memory_space<vmem>>, vector<8x256xf32>
      %cst_34 = arith.constant dense<0.000000e+00> : vector<8xf32>
      %46 = vector.multi_reduction <add>, %45, %cst_34 [1] : vector<8x256xf32> to vector<8xf32>
      %47 = vector.shape_cast %46 : vector<8xf32> to vector<8x1xf32>
      %c0_35 = arith.constant 0 : index
      %c0_36 = arith.constant 0 : index
      %48 = vector.load %arg8[%c0_35, %c0_36] : memref<8x256xf32, #tpu.memory_space<vmem>>, vector<8x256xf32>
      %cst_37 = arith.constant dense<0.000000e+00> : vector<8xf32>
      %49 = vector.multi_reduction <add>, %48, %cst_37 [1] : vector<8x256xf32> to vector<8xf32>
      %50 = vector.shape_cast %49 : vector<8xf32> to vector<8x1xf32>
      %51 = tpu.iota {dimensions = array<i32: 1>} : vector<8x128xi32>
      %c0_i32_38 = arith.constant 0 : i32
      %52 = vector.broadcast %c0_i32_38 : i32 to vector<8x128xi32>
      %53 = arith.cmpi eq, %51, %52 : vector<8x128xi32>
      %cst_39 = arith.constant 0.000000e+00 : f32
      %54 = vector.shape_cast %41 : vector<8x1xf32> to vector<8x1xf32>
      %55 = vector.broadcast %54 : vector<8x1xf32> to vector<8x128xf32>
      %56 = vector.broadcast %cst_39 : f32 to vector<8x128xf32>
      %57 = arith.select %53, %55, %56 : vector<8x128xi1>, vector<8x128xf32>
      %c1_i32 = arith.constant 1 : i32
      %58 = vector.broadcast %c1_i32 : i32 to vector<8x128xi32>
      %59 = arith.cmpi eq, %51, %58 : vector<8x128xi32>
      %60 = vector.shape_cast %44 : vector<8x1xf32> to vector<8x1xf32>
      %61 = vector.broadcast %60 : vector<8x1xf32> to vector<8x128xf32>
      %62 = arith.select %59, %61, %57 : vector<8x128xi1>, vector<8x128xf32>
      %c2_i32 = arith.constant 2 : i32
      %63 = vector.broadcast %c2_i32 : i32 to vector<8x128xi32>
      %64 = arith.cmpi eq, %51, %63 : vector<8x128xi32>
      %65 = vector.shape_cast %47 : vector<8x1xf32> to vector<8x1xf32>
      %66 = vector.broadcast %65 : vector<8x1xf32> to vector<8x128xf32>
      %67 = arith.select %64, %66, %62 : vector<8x128xi1>, vector<8x128xf32>
      %c3_i32 = arith.constant 3 : i32
      %68 = vector.broadcast %c3_i32 : i32 to vector<8x128xi32>
      %69 = arith.cmpi eq, %51, %68 : vector<8x128xi32>
      %70 = vector.shape_cast %50 : vector<8x1xf32> to vector<8x1xf32>
      %71 = vector.broadcast %70 : vector<8x1xf32> to vector<8x128xf32>
      %72 = arith.select %69, %71, %67 : vector<8x128xi1>, vector<8x128xf32>
      %c0_40 = arith.constant 0 : index
      %c0_41 = arith.constant 0 : index
      %c0_42 = arith.constant 0 : index
      %73 = vector.load %arg4[%c0_40, %c0_41, %c0_42] : memref<1x8x128xf32, #tpu.memory_space<vmem>>, vector<1x8x128xf32>
      %74 = vector.shape_cast %73 : vector<1x8x128xf32> to vector<8x128xf32>
      %75 = vector.shape_cast %72 : vector<8x128xf32> to vector<1x8x128xf32>
      tpu.vector_store %arg4[%c0_40, %c0_41, %c0_42], %75 {strides = array<i32>} : memref<1x8x128xf32, #tpu.memory_space<vmem>>, vector<1x8x128xf32>,
    } else {
    }
    return
  }
  func.func @transform_0(%arg0: i32, %arg1: i32) -> (i32, i32) {
    %c1_i32 = arith.constant 1 : i32
    %0 = arith.muli %arg0, %c1_i32 : i32
    %1 = arith.addi %0, %arg1 : i32
    %c0_i32 = arith.constant 0 : i32
    %c0_i32_0 = arith.constant 0 : i32
    return %c0_i32, %1 : i32, i32
  }
  func.func @transform_1(%arg0: i32, %arg1: i32) -> (i32, i32) {
    %c1_i32 = arith.constant 1 : i32
    %0 = arith.muli %arg0, %c1_i32 : i32
    %1 = arith.addi %0, %arg1 : i32
    %c0_i32 = arith.constant 0 : i32
    %c0_i32_0 = arith.constant 0 : i32
    return %c0_i32, %1 : i32, i32
  }
  func.func @transform_2(%arg0: i32, %arg1: i32) -> (i32, i32, i32) {
    %c0_i32 = arith.constant 0 : i32
    %c0_i32_0 = arith.constant 0 : i32
    %c0_i32_1 = arith.constant 0 : i32
    return %arg0, %c0_i32, %c0_i32_0 : i32, i32, i32
  }
}

</mosaic_0001>

<llo_original>
// kernel: tpu_custom_call.1
$region0: #{tpu_custom_call.1}
  #allocation0 [shape = 'u32[]', space=smem, size = 0x4, offset = 0x4, fixed_abs, tag = 'smem constant byte address 0x4 - core index']
  #allocation1 [shape = 'u32[144,128]{1,0:T(1,128)}', space=vmem, size = 0x12000, scoped, tag = 'internal scratch']
  #allocation2 [shape = 'f32[8,256]{1,0:T(8,128)}', space=vmem, size = 0x2000, scoped, tag = 'scratch operand']
  #allocation3 [shape = 'f32[8,256]{1,0:T(8,128)}', space=vmem, size = 0x2000, scoped, tag = 'scratch operand']
  #allocation4 [shape = 'f32[8,256]{1,0:T(8,128)}', space=vmem, size = 0x2000, scoped, tag = 'scratch operand']
  #allocation5 [shape = 'f32[8,256]{1,0:T(8,128)}', space=vmem, size = 0x2000, scoped, tag = 'scratch operand']
  %s0 = inlined_call_operand.hbm [shape: f32[8,256], index: 0, kind: input, shape index: {}]
  %s1 = inlined_call_operand.hbm [shape: f32[8,256], index: 1, kind: input, shape index: {}]
  %s2 = inlined_call_operand.hbm [shape: f32[1,8,128], index: 2, kind: output, shape index: {}]
  %s3 = sld [smem:[#allocation0]]
  $region34: #{tpu_custom_call.1} parent=0
    _
  %s5 = ssub.s32 1, %s3
  %s6 = scalar_select 0, %s5, %s3
  $region1: #{tpu_custom_call.1} parent=0
    #allocation6 [shape = 'u8[8192]{0}', space=vmem, size = 0x2000, scoped, tag = 'input window, operand 0, single buffered']
    #allocation7 [shape = 's32[1]{0}', space=sflag, size = 0x4, scoped, tag = 'scoped memory for tpu_custom_call.1']
    #allocation8 [shape = 's32[1]{0}', space=sflag, size = 0x4, scoped, tag = 'scoped memory for tpu_custom_call.1']
    #allocation9 [shape = 'u8[8192]{0}', space=vmem, size = 0x2000, scoped, tag = 'input window, operand 1, single buffered']
    #allocation10 [shape = 's32[1]{0}', space=sflag, size = 0x4, scoped, tag = 'scoped memory for tpu_custom_call.1']
    #allocation11 [shape = 'u8[4096]{0}', space=vmem, size = 0x1000, scoped, tag = 'output window, operand 0, single buffered']
    %7 = vsyncpa [#allocation7], 0
    %8 = vsyncpa [#allocation10], 0
    %9 = vsyncpa [#allocation8], 0
    // Predicated region
    $region2: #{tpu_custom_call.1} parent=1 // pred_check
      _
    $region3: #{tpu_custom_call.1} parent=1 // pred_check_branch
      %11 = sbr.rel (0) target = $region5
    $region4: #{tpu_custom_call.1} parent=1 // pred_region
      %s12 = sadd.s32 0, 0
      %s13 = smul.u32 2, %s12
      %s15 = ssub.s32 256, 256
      %16 = vsyncadd [#allocation7], %s15
      %s17 = smul.addr %s13, 128
      %s18 = scalar_lea.hbm %s0, %s17
      %s20 = sshll.u32 [#allocation6], 4
      %s21 = int_to_ptr.vmem [resolvable:$true] %s20
      %23 = dma.hbm_to_vmem [thread:$0]  %s18, 256, %s21, [#allocation7]
    $region5: #{tpu_custom_call.1} parent=1 // pred_fallthru
      _
    // Predicated region
    $region6: #{tpu_custom_call.1} parent=1 // pred_check
      _
    $region7: #{tpu_custom_call.1} parent=1 // pred_check_branch
      %25 = sbr.rel (0) target = $region9
    $region8: #{tpu_custom_call.1} parent=1 // pred_region
      %s26 = sadd.s32 0, 0
      %s27 = smul.u32 2, %s26
      %s29 = ssub.s32 256, 256
      %30 = vsyncadd [#allocation10], %s29
      %s31 = smul.addr %s27, 128
      %s32 = scalar_lea.hbm %s1, %s31
      %s34 = sshll.u32 [#allocation9], 4
      %s35 = int_to_ptr.vmem [resolvable:$true] %s34
      %37 = dma.hbm_to_vmem [thread:$0]  %s32, 256, %s35, [#allocation10]
    $region9: #{tpu_custom_call.1} parent=1 // pred_fallthru
      _
    // Predicated region
    $region10: #{tpu_custom_call.1} parent=1 // pred_check
      _
    $region11: #{tpu_custom_call.1} parent=1 // pred_check_branch
      %39 = sbr.rel (0) target = $region13
    $region12: #{tpu_custom_call.1} parent=1 // pred_region
      %40 = dma.done [#allocation7], 256
    $region13: #{tpu_custom_call.1} parent=1 // pred_fallthru
      _
    // Predicated region
    $region14: #{tpu_custom_call.1} parent=1 // pred_check
      _
    $region15: #{tpu_custom_call.1} parent=1 // pred_check_branch
      %42 = sbr.rel (0) target = $region17
    $region16: #{tpu_custom_call.1} parent=1 // pred_region
      %43 = dma.done [#allocation10], 256
    $region17: #{tpu_custom_call.1} parent=1 // pred_fallthru
      _
    %s44 = sadd.s32 0, 0
    %s45 = smul.u32 2, %s44
    %s46 = sadd.s32 0, 0
    %s47 = smul.u32 2, %s46
    %p48 = scmp.eq.s32.totalorder 0, 0
    // Predicated region
    $region18: #{tpu_custom_call.1} parent=1 // pred_check
      %p49 = pneg %p48
    $region19: #{tpu_custom_call.1} parent=1 // pred_check_branch
      %51 = sbr.rel (%p49) target = $region21
    $region20: #{tpu_custom_call.1} parent=1 // pred_region
      %52 = vst [vmem:[#allocation2] sm:$0xff] 0.0
      %53 = vst [vmem:[#allocation2 + $0x8] sm:$0xff] 0.0
      %54 = vst [vmem:[#allocation3] sm:$0xff] 0.0
      %55 = vst [vmem:[#allocation3 + $0x8] sm:$0xff] 0.0
      %56 = vst [vmem:[#allocation4] sm:$0xff] 0.0
      %57 = vst [vmem:[#allocation4 + $0x8] sm:$0xff] 0.0
      %58 = vst [vmem:[#allocation5] sm:$0xff] 0.0
      %59 = vst [vmem:[#allocation5 + $0x8] sm:$0xff] 0.0
    $region21: #{tpu_custom_call.1} parent=1 // pred_fallthru
      _
    %v60 = vld [vmem:[#allocation6] sm:$0xff]
    %v61 = vld [vmem:[#allocation6 + $0x8] sm:$0xff]
    %v62 = vld [vmem:[#allocation9] sm:$0xff]
    %v63 = vld [vmem:[#allocation9 + $0x8] sm:$0xff]
    %v64 = vand.u32 2147483647, %v60
    %v65 = vand.u32 2147483647, %v61
    %v66 = vsub.f32 0.0, %v64
    %v67 = vsub.f32 0.0, %v65
    %v68 = vmul.f32 %v66, 1.442695
    %v69 = vpow.pop %v68
    %v70 = vmul.f32 %v67, 1.442695
    %v71 = vpow.pop %v70
    %v72 = vadd.f32 %v69, 1.0
    %v73 = vadd.f32 %v71, 1.0
    %v74 = vrcp.pop %v72
    %v75 = vmul.f32 1.0, %v74
    %v76 = vrcp.pop %v73
    %v77 = vmul.f32 1.0, %v76
    %vm78 = vcmp.ge.f32.partialorder %v60, 0.0
    %vm79 = vcmp.ge.f32.partialorder %v61, 0.0
    %v80 = vmul.f32 %v69, %v75
    %v81 = vmul.f32 %v71, %v77
    %v82 = vsel %vm78, %v75, %v80
    %v83 = vsel %vm79, %v77, %v81
    %v84 = vmax.f32 %v60, 0.0
    %v85 = vmax.f32 %v61, 0.0
    %v86 = vmul.f32 %v60, %v62
    %v87 = vmul.f32 %v61, %v63
    %v88 = vsub.f32 %v84, %v86
    %v89 = vsub.f32 %v85, %v87
    %v90 = vadd.f32 %v69, 1.0
    %v91 = vlog2.pop %v90
    %v92 = vmul.f32 %v91, 0.6931472
    %v93 = vmul.f32 -0.5, %v69
    %v94 = vadd.f32 %v93, 1.0
    %v95 = vmul.f32 %v94, %v69
    %v96 = vand.u32 2147483647, %v69
    %vm97 = vcmp.lt.f32.partialorder %v96, 0.0004427343
    %v98 = vsel %vm97, %v95, %v92
    %v99 = vadd.f32 %v71, 1.0
    %v100 = vlog2.pop %v99
    %v101 = vmul.f32 %v100, 0.6931472
    %v102 = vmul.f32 -0.5, %v71
    %v103 = vadd.f32 %v102, 1.0
    %v104 = vmul.f32 %v103, %v71
    %v105 = vand.u32 2147483647, %v71
    %vm106 = vcmp.lt.f32.partialorder %v105, 0.0004427343
    %v107 = vsel %vm106, %v104, %v101
    %v108 = vadd.f32 %v88, %v98
    %v109 = vadd.f32 %v89, %v107
    %v110 = vld [vmem:[#allocation2] sm:$0xff]
    %v111 = vld [vmem:[#allocation2 + $0x8] sm:$0xff]
    %v112 = vmul.f32 %v82, %v62
    %v113 = vmul.f32 %v83, %v63
    %v114 = vadd.f32 %v110, %v112
    %v115 = vadd.f32 %v111, %v113
    %116 = vst [vmem:[#allocation2] sm:$0xff] %v114
    %117 = vst [vmem:[#allocation2 + $0x8] sm:$0xff] %v115
    %v118 = vld [vmem:[#allocation3] sm:$0xff]
    %v119 = vld [vmem:[#allocation3 + $0x8] sm:$0xff]
    %v120 = vadd.f32 %v118, %v82
    %v121 = vadd.f32 %v119, %v83
    %122 = vst [vmem:[#allocation3] sm:$0xff] %v120
    %123 = vst [vmem:[#allocation3 + $0x8] sm:$0xff] %v121
    %v124 = vld [vmem:[#allocation4] sm:$0xff]
    %v125 = vld [vmem:[#allocation4 + $0x8] sm:$0xff]
    %v126 = vadd.f32 %v124, %v62
    %v127 = vadd.f32 %v125, %v63
    %128 = vst [vmem:[#allocation4] sm:$0xff] %v126
    %129 = vst [vmem:[#allocation4 + $0x8] sm:$0xff] %v127
    %v130 = vld [vmem:[#allocation5] sm:$0xff]
    %v131 = vld [vmem:[#allocation5 + $0x8] sm:$0xff]
    %v132 = vadd.f32 %v130, %v108
    %v133 = vadd.f32 %v131, %v109
    %134 = vst [vmem:[#allocation5] sm:$0xff] %v132
    %135 = vst [vmem:[#allocation5 + $0x8] sm:$0xff] %v133
    // Predicated region
    $region22: #{tpu_custom_call.1} parent=1 // pred_check
      %p136 = pneg %p48
    $region23: #{tpu_custom_call.1} parent=1 // pred_check_branch
      %138 = sbr.rel (%p136) target = $region25
    $region24: #{tpu_custom_call.1} parent=1 // pred_region
      %v139 = vld [vmem:[#allocation2] sm:$0xff]
      %v140 = vld [vmem:[#allocation2 + $0x8] sm:$0xff]
      %v141 = vadd.f32 %v139, %v140
      %142 = vadd.xlane.f32.xlu0 %v141
      %v143 = vpop.xlane.xlu0 %142
      %v144 = vld [vmem:[#allocation3] sm:$0xff]
      %v145 = vld [vmem:[#allocation3 + $0x8] sm:$0xff]
      %v146 = vadd.f32 %v144, %v145
      %147 = vadd.xlane.f32.xlu0 %v146
      %v148 = vpop.xlane.xlu0 %147
      %v149 = vld [vmem:[#allocation4] sm:$0xff]
      %v150 = vld [vmem:[#allocation4 + $0x8] sm:$0xff]
      %v151 = vadd.f32 %v149, %v150
      %152 = vadd.xlane.f32.xlu0 %v151
      %v153 = vpop.xlane.xlu0 %152
      %v154 = vld [vmem:[#allocation5] sm:$0xff]
      %v155 = vld [vmem:[#allocation5 + $0x8] sm:$0xff]
      %v156 = vadd.f32 %v154, %v155
      %157 = vadd.xlane.f32.xlu0 %v156
      %v158 = vpop.xlane.xlu0 %157
      %v159 = vlaneseq
      %v160 = vand.u32 %v159, 127
      %vm161 = vcmp.eq.s32.totalorder %v160, 0
      %v162 = vsel %vm161, %v143, 0.0
      %vm163 = vcmp.eq.s32.totalorder %v160, 1
      %v164 = vsel %vm163, %v148, %v162
      %vm165 = vcmp.eq.s32.totalorder %v160, 2
      %v166 = vsel %vm165, %v153, %v164
      %vm167 = vcmp.eq.s32.totalorder %v160, 3
      %v168 = vsel %vm167, %v158, %v166
      %169 = vst [vmem:[#allocation11] sm:$0xff] %v168
    $region25: #{tpu_custom_call.1} parent=1 // pred_fallthru
      _
    // Predicated region
    $region26: #{tpu_custom_call.1} parent=1 // pred_check
      _
    $region27: #{tpu_custom_call.1} parent=1 // pred_check_branch
      %171 = sbr.rel (0) target = $region29
    $region28: #{tpu_custom_call.1} parent=1 // pred_region
      %s173 = ssub.s32 128, 128
      %174 = vsyncadd [#allocation8], %s173
      %s176 = sshll.u32 [#allocation11], 4
      %s177 = int_to_ptr.vmem [resolvable:$true] %s176
      %179 = dma.vmem_to_hbm [thread:$0]  %s177, 128, %s2, [#allocation8]
    $region29: #{tpu_custom_call.1} parent=1 // pred_fallthru
      _
    // Predicated region
    $region30: #{tpu_custom_call.1} parent=1 // pred_check
      _
    $region31: #{tpu_custom_call.1} parent=1 // pred_check_branch
      %181 = sbr.rel (0) target = $region33
    $region32: #{tpu_custom_call.1} parent=1 // pred_region
      %182 = dma.done [#allocation8], 128
    $region33: #{tpu_custom_call.1} parent=1 // pred_fallthru
      _
    %183 = vsyncpa [#allocation7], 1
    %184 = vsyncpa [#allocation10], 1
    %185 = vsyncpa [#allocation8], 1

</llo_original>
